<compile_context>
chip_gen: v5e
topology: v5e:2x2
jax: 0.10.0
libtpu: 0.0.40
codegen_flags: <defaults>
</compile_context>

<pallas_src>
import jax
import jax.numpy as jnp
from jax.experimental import pallas as pl
from jax.experimental.pallas import tpu as pltpu

ESP = 1e-12
LANE = 128
MAX_ROW_TILE = 1024   # 1024*128*4B = 512 KiB per input tile
NCORES = 2            # leading "parallel" grid axis (2 TCs on v7x)


def _cdiv(a, b):
    return (a + b - 1) // b


def _round_up(x, m):
    return _cdiv(x, m) * m


def _focal_kernel(pred_ref, target_ref, loss_out, npos_out, acc_loss, acc_npos):
    i = pl.program_id(1)

    # Reset the per-core vector accumulators at the start of each core's pass.
    @pl.when(i == 0)
    def _():
        acc_loss[...] = jnp.zeros_like(acc_loss)
        acc_npos[...] = jnp.zeros_like(acc_npos)

    pred = pred_ref[0]      # (tile, LANE) f32
    target = target_ref[0]  # (tile, LANE) f32

    pos = target == 1.0     # target.eq(1)
    neg = target < 1.0      # target.lt(1)

    one_m_pred = 1.0 - pred
    one_m_tgt = 1.0 - target
    t2 = one_m_tgt * one_m_tgt
    neg_w = t2 * t2                                   # (1 - target)^4, 2 VPU muls

    # Disjoint masks -> a single log per element.
    log_arg = jnp.where(pos, pred + ESP, one_m_pred + ESP)
    weight = jnp.where(pos, one_m_pred * one_m_pred,
                       jnp.where(neg, pred * pred * neg_w, 0.0))

    acc_loss[...] += jnp.log(log_arg) * weight
    acc_npos[...] += pos.astype(jnp.float32)

    # Single cross-lane reduction per core, on the last tile only.
    @pl.when(i == pl.num_programs(1) - 1)
    def _():
        loss_out[...] = jnp.zeros_like(loss_out) + jnp.sum(acc_loss[...])
        npos_out[...] = jnp.zeros_like(npos_out) + jnp.sum(acc_npos[...])


def focal_loss(pred, target):
    """Pallas implementation of FocalLoss.forward. Returns a scalar f32."""
    assert pred.shape == target.shape
    total = pred.size

    pred_flat = pred.reshape(-1).astype(jnp.float32)
    target_flat = target.reshape(-1).astype(jnp.float32)

    rows = _cdiv(total, LANE)
    # Row tile: large for real shapes, shrunk (but still a multiple of 8)
    # for tiny inputs so we don't pad wildly.
    tile = min(MAX_ROW_TILE, _round_up(_cdiv(rows, NCORES), 8))
    rows_per_core = _round_up(_cdiv(rows, NCORES), tile)
    padded_rows = NCORES * rows_per_core

    pad = padded_rows * LANE - total
    if pad:
        # Zero padding contributes exactly 0 to loss, neg weights and num_pos.
        pred_flat = jnp.pad(pred_flat, (0, pad))
        target_flat = jnp.pad(target_flat, (0, pad))

    pred3d = pred_flat.reshape(NCORES, rows_per_core, LANE)
    target3d = target_flat.reshape(NCORES, rows_per_core, LANE)

    tiles_per_core = rows_per_core // tile
    grid = (NCORES, tiles_per_core)

    part_shape = jax.ShapeDtypeStruct((NCORES, 8, LANE), jnp.float32)
    part_spec = pl.BlockSpec((1, 8, LANE), lambda c, i: (c, 0, 0))
    in_spec = pl.BlockSpec((1, tile, LANE), lambda c, i: (c, i, 0))

    loss_part, npos_part = pl.pallas_call(
        _focal_kernel,
        out_shape=(part_shape, part_shape),
        grid_spec=pltpu.PrefetchScalarGridSpec(
            num_scalar_prefetch=0,
            grid=grid,
            in_specs=[in_spec, in_spec],
            out_specs=(part_spec, part_spec),
            scratch_shapes=[
                pltpu.VMEM((tile, LANE), jnp.float32),  # acc_loss
                pltpu.VMEM((tile, LANE), jnp.float32),  # acc_npos
            ],
        ),
        compiler_params=pltpu.CompilerParams(
            dimension_semantics=("parallel", "arbitrary"),
        ),
    )(pred3d, target3d)

    loss_sum = jnp.sum(loss_part[:, 0, 0])   # pos_loss + neg_loss (all cores)
    num_pos = jnp.sum(npos_part[:, 0, 0])

    # if num_pos == 0: loss = -neg_loss  (pos_loss is identically 0 then)
    # else:            loss = -(pos_loss + neg_loss) / num_pos
    return jnp.where(num_pos == 0.0, -loss_sum, -loss_sum / num_pos)


def focal_loss_ref(pred, target):
    """Pure-JAX reference mirroring the PyTorch forward."""
    pred = pred.astype(jnp.float32)
    target = target.astype(jnp.float32)
    pos_inds = (target == 1.0).astype(jnp.float32)
    neg_inds = (target < 1.0).astype(jnp.float32)
    neg_weights = jnp.power(1.0 - target, 4)
    pos_loss = jnp.sum(jnp.log(pred + ESP) * jnp.square(1.0 - pred) * pos_inds)
    neg_loss = jnp.sum(jnp.log(1.0 - pred + ESP) * jnp.square(pred) * neg_weights * neg_inds)
    num_pos = jnp.sum(pos_inds)
    return jnp.where(num_pos == 0.0, -neg_loss, -(pos_loss + neg_loss) / num_pos)


if __name__ == "__main__":
    key = jax.random.PRNGKey(0)
    k_pred, k_tgt = jax.random.split(key)

    B, C, H, W = 2, 4, 16, 16
    # Predictions in (0, 1), like post-sigmoid heatmap scores.
    pred = jax.random.uniform(k_pred, (B, C, H, W), jnp.float32, 1e-4, 1.0 - 1e-4)
    # Targets: gaussian-splat-like heatmap in [0, 1) with some entries exactly 1.
    raw = jax.random.uniform(k_tgt, (B, C, H, W), jnp.float32, 0.0, 1.0)
    target = jnp.where(raw > 0.9, jnp.float32(1.0), raw * 0.9)

    out = focal_loss(pred, target)
    jax.block_until_ready(out)

    ref = focal_loss_ref(pred, target)
    assert jnp.allclose(out, ref, rtol=1e-5, atol=1e-5), (out, ref)

    print("KERNEL_OK")
</pallas_src>

<mosaic_0001>
module attributes {stable_mosaic.version = 11 : i64} {
  func.func @_focal_kernel(%arg0: i32, %arg1: i32, %arg2: memref<1x8x128xf32, #tpu.memory_space<vmem>>, %arg3: memref<1x8x128xf32, #tpu.memory_space<vmem>>, %arg4: memref<1x8x128xf32, #tpu.memory_space<vmem>>, %arg5: memref<1x8x128xf32, #tpu.memory_space<vmem>>, %arg6: memref<8x128xf32, #tpu.memory_space<vmem>>, %arg7: memref<8x128xf32, #tpu.memory_space<vmem>>) attributes {dimension_semantics = [#tpu.dimension_semantics<parallel>, #tpu.dimension_semantics<arbitrary>], iteration_bounds = array<i64: 2, 1>, scalar_prefetch = 0 : i64, scratch_operands = 2 : i64, tpu.core_type = #tpu.core_type<tc>, window_params = [{transform_indices = @transform_0, window_bounds = array<i64: 1, 8, 128>}, {transform_indices = @transform_1, window_bounds = array<i64: 1, 8, 128>}, {transform_indices = @transform_2, window_bounds = array<i64: 1, 8, 128>}, {transform_indices = @transform_3, window_bounds = array<i64: 1, 8, 128>}]} {
    %c0_i32 = arith.constant 0 : i32
    %0 = arith.cmpi eq, %arg1, %c0_i32 : i32
    %1 = arith.extui %0 : i1 to i32
    %c0_i32_0 = arith.constant 0 : i32
    %2 = arith.cmpi ne, %1, %c0_i32_0 : i32
    scf.if %2 {
      %cst_22 = arith.constant 0.000000e+00 : f32
      %41 = vector.broadcast %cst_22 : f32 to vector<8x128xf32>
      %c0_23 = arith.constant 0 : index
      %c0_24 = arith.constant 0 : index
      %42 = vector.load %arg6[%c0_23, %c0_24] : memref<8x128xf32, #tpu.memory_space<vmem>>, vector<8x128xf32>
      tpu.vector_store %arg6[%c0_23, %c0_24], %41 {strides = array<i32>} : memref<8x128xf32, #tpu.memory_space<vmem>>, vector<8x128xf32>,
      %cst_25 = arith.constant 0.000000e+00 : f32
      %43 = vector.broadcast %cst_25 : f32 to vector<8x128xf32>
      %c0_26 = arith.constant 0 : index
      %c0_27 = arith.constant 0 : index
      %44 = vector.load %arg7[%c0_26, %c0_27] : memref<8x128xf32, #tpu.memory_space<vmem>>, vector<8x128xf32>
      tpu.vector_store %arg7[%c0_26, %c0_27], %43 {strides = array<i32>} : memref<8x128xf32, #tpu.memory_space<vmem>>, vector<8x128xf32>,
    } else {
    }
    %c0 = arith.constant 0 : index
    %c0_1 = arith.constant 0 : index
    %c0_2 = arith.constant 0 : index
    %3 = vector.load %arg2[%c0, %c0_1, %c0_2] : memref<1x8x128xf32, #tpu.memory_space<vmem>>, vector<1x8x128xf32>
    %4 = vector.shape_cast %3 : vector<1x8x128xf32> to vector<8x128xf32>
    %c0_3 = arith.constant 0 : index
    %c0_4 = arith.constant 0 : index
    %c0_5 = arith.constant 0 : index
    %5 = vector.load %arg3[%c0_3, %c0_4, %c0_5] : memref<1x8x128xf32, #tpu.memory_space<vmem>>, vector<1x8x128xf32>
    %6 = vector.shape_cast %5 : vector<1x8x128xf32> to vector<8x128xf32>
    %cst = arith.constant 1.000000e+00 : f32
    %7 = vector.broadcast %cst : f32 to vector<8x128xf32>
    %8 = arith.cmpf oeq, %6, %7 : vector<8x128xf32>
    %cst_6 = arith.constant 1.000000e+00 : f32
    %9 = vector.broadcast %cst_6 : f32 to vector<8x128xf32>
    %10 = arith.cmpf olt, %6, %9 : vector<8x128xf32>
    %cst_7 = arith.constant 1.000000e+00 : f32
    %11 = vector.broadcast %cst_7 : f32 to vector<8x128xf32>
    %12 = arith.subf %11, %4 : vector<8x128xf32>
    %cst_8 = arith.constant 1.000000e+00 : f32
    %13 = vector.broadcast %cst_8 : f32 to vector<8x128xf32>
    %14 = arith.subf %13, %6 : vector<8x128xf32>
    %15 = arith.mulf %14, %14 : vector<8x128xf32>
    %16 = arith.mulf %15, %15 : vector<8x128xf32>
    %cst_9 = arith.constant 9.99999996E-13 : f32
    %17 = vector.broadcast %cst_9 : f32 to vector<8x128xf32>
    %18 = arith.addf %4, %17 : vector<8x128xf32>
    %cst_10 = arith.constant 9.99999996E-13 : f32
    %19 = vector.broadcast %cst_10 : f32 to vector<8x128xf32>
    %20 = arith.addf %12, %19 : vector<8x128xf32>
    %21 = arith.select %8, %18, %20 : vector<8x128xi1>, vector<8x128xf32>
    %22 = arith.mulf %12, %12 : vector<8x128xf32>
    %23 = arith.mulf %4, %4 : vector<8x128xf32>
    %24 = arith.mulf %23, %16 : vector<8x128xf32>
    %cst_11 = arith.constant 0.000000e+00 : f32
    %25 = vector.broadcast %cst_11 : f32 to vector<8x128xf32>
    %26 = arith.select %10, %24, %25 : vector<8x128xi1>, vector<8x128xf32>
    %27 = arith.select %8, %22, %26 : vector<8x128xi1>, vector<8x128xf32>
    %c0_12 = arith.constant 0 : index
    %c0_13 = arith.constant 0 : index
    %28 = vector.load %arg6[%c0_12, %c0_13] : memref<8x128xf32, #tpu.memory_space<vmem>>, vector<8x128xf32>
    %29 = math.log %21 : vector<8x128xf32>
    %30 = arith.mulf %29, %27 : vector<8x128xf32>
    %31 = arith.addf %28, %30 : vector<8x128xf32>
    %c0_14 = arith.constant 0 : index
    %c0_15 = arith.constant 0 : index
    %32 = vector.load %arg6[%c0_14, %c0_15] : memref<8x128xf32, #tpu.memory_space<vmem>>, vector<8x128xf32>
    tpu.vector_store %arg6[%c0_14, %c0_15], %31 {strides = array<i32>} : memref<8x128xf32, #tpu.memory_space<vmem>>, vector<8x128xf32>,
    %c0_16 = arith.constant 0 : index
    %c0_17 = arith.constant 0 : index
    %33 = vector.load %arg7[%c0_16, %c0_17] : memref<8x128xf32, #tpu.memory_space<vmem>>, vector<8x128xf32>
    %34 = arith.extui %8 : vector<8x128xi1> to vector<8x128xi32>
    %35 = arith.sitofp %34 : vector<8x128xi32> to vector<8x128xf32>
    %36 = arith.addf %33, %35 : vector<8x128xf32>
    %c0_18 = arith.constant 0 : index
    %c0_19 = arith.constant 0 : index
    %37 = vector.load %arg7[%c0_18, %c0_19] : memref<8x128xf32, #tpu.memory_space<vmem>>, vector<8x128xf32>
    tpu.vector_store %arg7[%c0_18, %c0_19], %36 {strides = array<i32>} : memref<8x128xf32, #tpu.memory_space<vmem>>, vector<8x128xf32>,
    %c0_i32_20 = arith.constant 0 : i32
    %38 = arith.cmpi eq, %arg1, %c0_i32_20 : i32
    %39 = arith.extui %38 : i1 to i32
    %c0_i32_21 = arith.constant 0 : i32
    %40 = arith.cmpi ne, %39, %c0_i32_21 : i32
    scf.if %40 {
      %cst_22 = arith.constant 0.000000e+00 : f32
      %41 = vector.broadcast %cst_22 : f32 to vector<1x8x128xf32>
      %c0_23 = arith.constant 0 : index
      %c0_24 = arith.constant 0 : index
      %42 = vector.load %arg6[%c0_23, %c0_24] : memref<8x128xf32, #tpu.memory_space<vmem>>, vector<8x128xf32>
      %43 = vector.shape_cast %42 : vector<8x128xf32> to vector<1x8x128xf32>
      %cst_25 = arith.constant dense<0.000000e+00> : vector<1xf32>
      %44 = vector.multi_reduction <add>, %43, %cst_25 [1, 2] : vector<1x8x128xf32> to vector<1xf32>
      %45 = vector.shape_cast %44 : vector<1xf32> to vector<1x1x1xf32>
      %46 = vector.extract %45[0, 0, 0] : f32 from vector<1x1x1xf32>
      %47 = vector.broadcast %46 : f32 to vector<1x8x128xf32>
      %48 = arith.addf %41, %47 : vector<1x8x128xf32>
      %c0_26 = arith.constant 0 : index
      %c0_27 = arith.constant 0 : index
      %c0_28 = arith.constant 0 : index
      %49 = vector.load %arg4[%c0_26, %c0_27, %c0_28] : memref<1x8x128xf32, #tpu.memory_space<vmem>>, vector<1x8x128xf32>
      tpu.vector_store %arg4[%c0_26, %c0_27, %c0_28], %48 {strides = array<i32>} : memref<1x8x128xf32, #tpu.memory_space<vmem>>, vector<1x8x128xf32>,
      %cst_29 = arith.constant 0.000000e+00 : f32
      %50 = vector.broadcast %cst_29 : f32 to vector<1x8x128xf32>
      %c0_30 = arith.constant 0 : index
      %c0_31 = arith.constant 0 : index
      %51 = vector.load %arg7[%c0_30, %c0_31] : memref<8x128xf32, #tpu.memory_space<vmem>>, vector<8x128xf32>
      %52 = vector.shape_cast %51 : vector<8x128xf32> to vector<1x8x128xf32>
      %cst_32 = arith.constant dense<0.000000e+00> : vector<1xf32>
      %53 = vector.multi_reduction <add>, %52, %cst_32 [1, 2] : vector<1x8x128xf32> to vector<1xf32>
      %54 = vector.shape_cast %53 : vector<1xf32> to vector<1x1x1xf32>
      %55 = vector.extract %54[0, 0, 0] : f32 from vector<1x1x1xf32>
      %56 = vector.broadcast %55 : f32 to vector<1x8x128xf32>
      %57 = arith.addf %50, %56 : vector<1x8x128xf32>
      %c0_33 = arith.constant 0 : index
      %c0_34 = arith.constant 0 : index
      %c0_35 = arith.constant 0 : index
      %58 = vector.load %arg5[%c0_33, %c0_34, %c0_35] : memref<1x8x128xf32, #tpu.memory_space<vmem>>, vector<1x8x128xf32>
      tpu.vector_store %arg5[%c0_33, %c0_34, %c0_35], %57 {strides = array<i32>} : memref<1x8x128xf32, #tpu.memory_space<vmem>>, vector<1x8x128xf32>,
    } else {
    }
    return
  }
  func.func @transform_0(%arg0: i32, %arg1: i32) -> (i32, i32, i32) {
    %c0_i32 = arith.constant 0 : i32
    %c0_i32_0 = arith.constant 0 : i32
    return %arg0, %arg1, %c0_i32 : i32, i32, i32
  }
  func.func @transform_1(%arg0: i32, %arg1: i32) -> (i32, i32, i32) {
    %c0_i32 = arith.constant 0 : i32
    %c0_i32_0 = arith.constant 0 : i32
    return %arg0, %arg1, %c0_i32 : i32, i32, i32
  }
  func.func @transform_2(%arg0: i32, %arg1: i32) -> (i32, i32, i32) {
    %c0_i32 = arith.constant 0 : i32
    %c0_i32_0 = arith.constant 0 : i32
    %c0_i32_1 = arith.constant 0 : i32
    return %arg0, %c0_i32, %c0_i32_0 : i32, i32, i32
  }
  func.func @transform_3(%arg0: i32, %arg1: i32) -> (i32, i32, i32) {
    %c0_i32 = arith.constant 0 : i32
    %c0_i32_0 = arith.constant 0 : i32
    %c0_i32_1 = arith.constant 0 : i32
    return %arg0, %c0_i32, %c0_i32_0 : i32, i32, i32
  }
}

</mosaic_0001>

<llo_original>
// kernel: tpu_custom_call.1
$region0: #{tpu_custom_call.1}
  #allocation0 [shape = 'u32[]', space=smem, size = 0x4, offset = 0x4, fixed_abs, tag = 'smem constant byte address 0x4 - core index']
  #allocation1 [shape = 'u32[72,128]{1,0:T(1,128)}', space=vmem, size = 0x9000, scoped, tag = 'internal scratch']
  #allocation2 [shape = 'f32[8,128]{1,0:T(8,128)}', space=vmem, size = 0x1000, scoped, tag = 'scratch operand']
  #allocation3 [shape = 'f32[8,128]{1,0:T(8,128)}', space=vmem, size = 0x1000, scoped, tag = 'scratch operand']
  %s0 = inlined_call_operand.hbm [shape: f32[2,8,128], index: 0, kind: input, shape index: {}]
  %s1 = inlined_call_operand.hbm [shape: f32[2,8,128], index: 1, kind: input, shape index: {}]
  %s2 = inlined_call_operand.hbm [shape: f32[2,8,128], index: 2, kind: output, shape index: {0}]
  %s3 = inlined_call_operand.hbm [shape: f32[2,8,128], index: 3, kind: output, shape index: {1}]
  %4 = xla_tuple %s2, %s3
  %s5 = sld [smem:[#allocation0]]
  $region65: #{tpu_custom_call.1} parent=0
    _
  %s7 = ssub.s32 1, %s5
  %s8 = scalar_select 0, %s7, %s5
  $region1: #{tpu_custom_call.1} parent=0
    #allocation4 [shape = 'u8[8192]{0}', space=vmem, size = 0x2000, scoped, tag = 'input window, operand 0']
    #allocation5 [shape = 's32[2]{0}', space=sflag, size = 0x8, scoped, tag = 'scoped memory for tpu_custom_call.1']
    #allocation6 [shape = 's32[2]{0}', space=sflag, size = 0x8, scoped, tag = 'scoped memory for tpu_custom_call.1']
    #allocation7 [shape = 'u8[8192]{0}', space=vmem, size = 0x2000, scoped, tag = 'input window, operand 1']
    #allocation8 [shape = 's32[2]{0}', space=sflag, size = 0x8, scoped, tag = 'scoped memory for tpu_custom_call.1']
    #allocation9 [shape = 'u8[8192]{0}', space=vmem, size = 0x2000, scoped, tag = 'output window, operand 0']
    #allocation10 [shape = 'u8[8192]{0}', space=vmem, size = 0x2000, scoped, tag = 'output window, operand 1']
    #allocation11 [shape = 's32[2]{0}', space=sflag, size = 0x8, scoped, tag = 'scoped memory for tpu_custom_call.1']
    %9 = vsyncpa [#allocation5], 0
    %s10 = scalar_lea.sflag [#allocation5], 1
    %11 = vsyncpa %s10, 0
    %12 = vsyncpa [#allocation8], 0
    %s13 = scalar_lea.sflag [#allocation8], 1
    %14 = vsyncpa %s13, 0
    %15 = vsyncpa [#allocation6], 0
    %s16 = scalar_lea.sflag [#allocation6], 1
    %17 = vsyncpa %s16, 0
    %18 = vsyncpa [#allocation11], 0
    %s19 = scalar_lea.sflag [#allocation11], 1
    %20 = vsyncpa %s19, 0
    loop: start=0, step=1, limit=4
    $region2: #{tpu_custom_call.1} parent=1 // loop_pre_header
      _
    $region3: #{tpu_custom_call.1} parent=1 // loop_header
      %s22 = sphi 0, %s26
      %p23 = scmp.ge.s32.totalorder %s22, 4
      %s29 = sphi 0, %s41
      %s30 = sphi 0, %s37
      %s31 = sphi 0, %s29
      %s32 = sphi 0, %s30
      %s33 = sphi 0, %s31
      %s34 = sphi 0, %s32
      %s46 = sphi 0, %s48
      %s49 = sphi 0, %s46
      %s50 = sphi 0, %s49
      %s66 = sphi 0, %s50
      %s74 = sphi 0, %s76
      %s77 = sphi 0, %s74
      %s78 = sphi 0, %s77
      %s94 = sphi 0, %s78
      %s100 = sphi 0, %s102
      %s103 = sphi 0, %s100
      %s104 = sphi 0, %s103
      %s120 = sphi 0, %s104
      %s126 = sphi 0, %s128
      %s129 = sphi 0, %s126
      %s130 = sphi 0, %s129
      %s146 = sphi 0, %s130
    $region4: #{tpu_custom_call.1} parent=1 // loop_header_branch
      %25 = sbr.rel (%p23) target = $region8
    $region5: #{tpu_custom_call.1} parent=1 // loop_body
      %s27 = ssub.s32 %s22, 1
      %s28 = ssub.s32 %s22, 2
      %s35 = sadd.s32 1, %s30
      %p36 = scmp.ge.s32.totalorder %s35, 1
      %s37 = scalar_select %p36, 0, %s35
      %s38 = sadd.s32 1, %s29
      %s39 = scalar_select %p36, %s38, %s29
      %p40 = scmp.ge.s32.totalorder %s39, 2
      %s41 = scalar_select %p40, 0, %s39
      %s42 = ssub.s32 %s29, %s41
      %s43 = ssub.s32 %s30, %s37
      %s44 = sor.u32 %s42, %s43
      %p45 = scmp.eq.s32.totalorder %s44, 0
      %s47 = sadd.s32 %s46, 1
      %s48 = scalar_select %p45, %s46, %s47
      %p51 = pneg %p45
      %p52 = scmp.eq.s32.totalorder %s22, 1
      %p53 = por %p51, %p52
      %p54 = scmp.ne.s32.totalorder %s46, %s49
      %p55 = scmp.eq.s32.totalorder %s22, 0
      %p56 = por %p54, %p55
      %p57 = scmp.ne.s32.totalorder %s46, %s49
      %p58 = scmp.eq.s32.totalorder %s27, 1
      %p59 = por %p57, %p58
      %p60 = scmp.ne.s32.totalorder %s49, %s50
      %p61 = scmp.eq.s32.totalorder %s27, 0
      %p62 = por %p60, %p61
      %p63 = scmp.ne.s32.totalorder %s49, %s50
      %p64 = scmp.eq.s32.totalorder %s28, 1
      %p65 = por %p63, %p64
      %p67 = scmp.ne.s32.totalorder %s50, %s66
      %p68 = scmp.eq.s32.totalorder %s28, 0
      %p69 = por %p67, %p68
      %s70 = ssub.s32 %s29, %s41
      %s71 = ssub.s32 %s30, %s37
      %s72 = sor.u32 %s70, %s71
      %p73 = scmp.eq.s32.totalorder %s72, 0
      %s75 = sadd.s32 %s74, 1
      %s76 = scalar_select %p73, %s74, %s75
      %p79 = pneg %p73
      %p80 = scmp.eq.s32.totalorder %s22, 1
      %p81 = por %p79, %p80
      %p82 = scmp.ne.s32.totalorder %s74, %s77
      %p83 = scmp.eq.s32.totalorder %s22, 0
      %p84 = por %p82, %p83
      %p85 = scmp.ne.s32.totalorder %s74, %s77
      %p86 = scmp.eq.s32.totalorder %s27, 1
      %p87 = por %p85, %p86
      %p88 = scmp.ne.s32.totalorder %s77, %s78
      %p89 = scmp.eq.s32.totalorder %s27, 0
      %p90 = por %p88, %p89
      %p91 = scmp.ne.s32.totalorder %s77, %s78
      %p92 = scmp.eq.s32.totalorder %s28, 1
      %p93 = por %p91, %p92
      %p95 = scmp.ne.s32.totalorder %s78, %s94
      %p96 = scmp.eq.s32.totalorder %s28, 0
      %p97 = por %p95, %p96
      %s98 = ssub.s32 %s29, %s41
      %p99 = scmp.eq.s32.totalorder %s98, 0
      %s101 = sadd.s32 %s100, 1
      %s102 = scalar_select %p99, %s100, %s101
      %p105 = pneg %p99
      %p106 = scmp.eq.s32.totalorder %s22, 1
      %p107 = por %p105, %p106
      %p108 = scmp.ne.s32.totalorder %s100, %s103
      %p109 = scmp.eq.s32.totalorder %s22, 0
      %p110 = por %p108, %p109
      %p111 = scmp.ne.s32.totalorder %s100, %s103
      %p112 = scmp.eq.s32.totalorder %s27, 1
      %p113 = por %p111, %p112
      %p114 = scmp.ne.s32.totalorder %s103, %s104
      %p115 = scmp.eq.s32.totalorder %s27, 0
      %p116 = por %p114, %p115
      %p117 = scmp.ne.s32.totalorder %s103, %s104
      %p118 = scmp.eq.s32.totalorder %s28, 1
      %p119 = por %p117, %p118
      %p121 = scmp.ne.s32.totalorder %s104, %s120
      %p122 = scmp.eq.s32.totalorder %s28, 0
      %p123 = por %p121, %p122
      %s124 = ssub.s32 %s29, %s41
      %p125 = scmp.eq.s32.totalorder %s124, 0
      %s127 = sadd.s32 %s126, 1
      %s128 = scalar_select %p125, %s126, %s127
      %p131 = pneg %p125
      %p132 = scmp.eq.s32.totalorder %s22, 1
      %p133 = por %p131, %p132
      %p134 = scmp.ne.s32.totalorder %s126, %s129
      %p135 = scmp.eq.s32.totalorder %s22, 0
      %p136 = por %p134, %p135
      %p137 = scmp.ne.s32.totalorder %s126, %s129
      %p138 = scmp.eq.s32.totalorder %s27, 1
      %p139 = por %p137, %p138
      %p140 = scmp.ne.s32.totalorder %s129, %s130
      %p141 = scmp.eq.s32.totalorder %s27, 0
      %p142 = por %p140, %p141
      %p143 = scmp.ne.s32.totalorder %s129, %s130
      %p144 = scmp.eq.s32.totalorder %s28, 1
      %p145 = por %p143, %p144
      %p147 = scmp.ne.s32.totalorder %s130, %s146
      %p148 = scmp.eq.s32.totalorder %s28, 0
      %p149 = por %p147, %p148
      %p150 = scmp.le.s32.totalorder 1, %s22
      %p151 = scmp.lt.s32.totalorder %s22, 3
      %p152 = pnand %p150, %p151
      %p153 = pneg %p152
      // Predicated region
      $region9: #{tpu_custom_call.1} parent=5 // pred_check
        _
      $region10: #{tpu_custom_call.1} parent=5 // pred_check_branch
        %155 = sbr.rel (%p152) target = $region12
      $region11: #{tpu_custom_call.1} parent=5 // pred_region
        %s156 = ssub.s32 %s22, 1
      $region12: #{tpu_custom_call.1} parent=5 // pred_fallthru
        _
      %p157 = scmp.lt.s32.totalorder %s22, 2
      // Predicated region
      $region13: #{tpu_custom_call.1} parent=5 // pred_check
        %p158 = pneg %p157
      $region14: #{tpu_custom_call.1} parent=5 // pred_check_branch
        %160 = sbr.rel (%p158) target = $region16
      $region15: #{tpu_custom_call.1} parent=5 // pred_region
        // Predicated region
        $region17: #{tpu_custom_call.1} parent=15 // pred_check
          %p161 = pneg %p56
        $region18: #{tpu_custom_call.1} parent=15 // pred_check_branch
          %163 = sbr.rel (%p161) target = $region20
        $region19: #{tpu_custom_call.1} parent=15 // pred_region
          %s164 = sand.u32 %s46, 1
          %s165 = scalar_lea.sflag [#allocation5], %s164
          %s166 = sand.u32 %s46, 1
          %s167 = smul.addr %s166, 8
          %s168 = scalar_lea.vmem [#allocation4], %s167
          %170 = vsyncadd %s165, 0
          %s171 = sadd.s32 %s30, %s29
          %s172 = smul.addr %s171, 8
          %s173 = scalar_lea.hbm %s0, %s172
          %s175 = sshll.u32 %s173, 4
          %s176 = int_to_ptr.hbm [resolvable:$true] %s175
          %s177 = sshll.u32 %s168, 4
          %s178 = int_to_ptr.vmem [resolvable:$true] %s177
          %180 = dma.hbm_to_vmem [thread:$0]  %s176, 128, %s178, %s165
        $region20: #{tpu_custom_call.1} parent=15 // pred_fallthru
          _
        // Predicated region
        $region21: #{tpu_custom_call.1} parent=15 // pred_check
          %p181 = pneg %p84
        $region22: #{tpu_custom_call.1} parent=15 // pred_check_branch
          %183 = sbr.rel (%p181) target = $region24
        $region23: #{tpu_custom_call.1} parent=15 // pred_region
          %s184 = sand.u32 %s74, 1
          %s185 = scalar_lea.sflag [#allocation8], %s184
          %s186 = sand.u32 %s74, 1
          %s187 = smul.addr %s186, 8
          %s188 = scalar_lea.vmem [#allocation7], %s187
          %190 = vsyncadd %s185, 0
          %s191 = sadd.s32 %s30, %s29
          %s192 = smul.addr %s191, 8
          %s193 = scalar_lea.hbm %s1, %s192
          %s195 = sshll.u32 %s193, 4
          %s196 = int_to_ptr.hbm [resolvable:$true] %s195
          %s197 = sshll.u32 %s188, 4
          %s198 = int_to_ptr.vmem [resolvable:$true] %s197
          %200 = dma.hbm_to_vmem [thread:$0]  %s196, 128, %s198, %s185
        $region24: #{tpu_custom_call.1} parent=15 // pred_fallthru
          _
      $region16: #{tpu_custom_call.1} parent=5 // pred_fallthru
        _
      %p201 = scmp.le.s32.totalorder 1, %s22
      %p202 = scmp.lt.s32.totalorder %s22, 3
      %p203 = pnand %p201, %p202
      %p204 = pneg %p203
      // Predicated region
      $region25: #{tpu_custom_call.1} parent=5 // pred_check
        _
      $region26: #{tpu_custom_call.1} parent=5 // pred_check_branch
        %206 = sbr.rel (%p203) target = $region28
      $region27: #{tpu_custom_call.1} parent=5 // pred_region
        %s207 = ssub.s32 %s22, 1
        %s208 = sand.u32 %s49, 1
        %s209 = scalar_lea.sflag [#allocation5], %s208
        %s210 = sand.u32 %s49, 1
        %s211 = smul.addr %s210, 8
        %s212 = scalar_lea.vmem [#allocation4], %s211
        // Predicated region
        $region29: #{tpu_custom_call.1} parent=27 // pred_check
          %p213 = pneg %p62
        $region30: #{tpu_custom_call.1} parent=27 // pred_check_branch
          %215 = sbr.rel (%p213) target = $region32
        $region31: #{tpu_custom_call.1} parent=27 // pred_region
          %217 = dma.done %s209, 128
        $region32: #{tpu_custom_call.1} parent=27 // pred_fallthru
          _
        %s218 = sand.u32 %s77, 1
        %s219 = scalar_lea.sflag [#allocation8], %s218
        %s220 = sand.u32 %s77, 1
        %s221 = smul.addr %s220, 8
        %s222 = scalar_lea.vmem [#allocation7], %s221
        // Predicated region
        $region33: #{tpu_custom_call.1} parent=27 // pred_check
          %p223 = pneg %p90
        $region34: #{tpu_custom_call.1} parent=27 // pred_check_branch
          %225 = sbr.rel (%p223) target = $region36
        $region35: #{tpu_custom_call.1} parent=27 // pred_region
          %227 = dma.done %s219, 128
        $region36: #{tpu_custom_call.1} parent=27 // pred_fallthru
          _
        %s228 = sand.u32 %s49, 1
        %s229 = scalar_lea.sflag [#allocation5], %s228
        %s230 = sand.u32 %s49, 1
        %s231 = smul.addr %s230, 8
        %s232 = scalar_lea.vmem [#allocation4], %s231
        %p233 = pneg %p62
        %p234 = pneg %p59
        %s235 = sand.u32 %s77, 1
        %s236 = scalar_lea.sflag [#allocation8], %s235
        %s237 = sand.u32 %s77, 1
        %s238 = smul.addr %s237, 8
        %s239 = scalar_lea.vmem [#allocation7], %s238
        %p240 = pneg %p90
        %p241 = pneg %p87
        %p242 = pneg %p116
        %p243 = pneg %p113
        %s244 = sand.u32 %s103, 1
        %s245 = scalar_lea.sflag [#allocation6], %s244
        %s246 = sand.u32 %s103, 1
        %s247 = smul.addr %s246, 8
        %s248 = scalar_lea.vmem [#allocation9], %s247
        %p249 = pneg %p142
        %p250 = pneg %p139
        %s251 = sand.u32 %s129, 1
        %s252 = scalar_lea.sflag [#allocation11], %s251
        %s253 = sand.u32 %s129, 1
        %s254 = smul.addr %s253, 8
        %s255 = scalar_lea.vmem [#allocation10], %s254
        %p256 = scmp.eq.s32.totalorder %s32, 0
        // Predicated region
        $region37: #{tpu_custom_call.1} parent=27 // pred_check
          %p257 = pneg %p256
        $region38: #{tpu_custom_call.1} parent=27 // pred_check_branch
          %259 = sbr.rel (%p257) target = $region40
        $region39: #{tpu_custom_call.1} parent=27 // pred_region
          %260 = vst [vmem:[#allocation2] sm:$0xff] 0.0
          %261 = vst [vmem:[#allocation3] sm:$0xff] 0.0
        $region40: #{tpu_custom_call.1} parent=27 // pred_fallthru
          _
        %v262 = vld [vmem:[%s212] sm:$0xff]
        %v263 = vld [vmem:[%s222] sm:$0xff]
        %vm264 = vcmp.eq.f32.partialorder %v263, 1.0
        %vm265 = vcmp.lt.f32.partialorder %v263, 1.0
        %v266 = vsub.f32 1.0, %v262
        %v267 = vsub.f32 1.0, %v263
        %v268 = vmul.f32 %v267, %v267
        %v269 = vmul.f32 %v268, %v268
        %v270 = vadd.f32 %v262, 1e-12
        %v271 = vadd.f32 %v266, 1e-12
        %v272 = vsel %vm264, %v270, %v271
        %v273 = vmul.f32 %v266, %v266
        %v274 = vmul.f32 %v262, %v262
        %v275 = vmul.f32 %v274, %v269
        %v276 = vsel %vm265, %v275, 0.0
        %v277 = vsel %vm264, %v273, %v276
        %v278 = vld [vmem:[#allocation2] sm:$0xff]
        %v279 = vlog2.pop %v272
        %v280 = vmul.f32 %v279, 0.6931472
        %v281 = vmul.f32 %v280, %v277
        %v282 = vadd.f32 %v278, %v281
        %283 = vst [vmem:[#allocation2] sm:$0xff] %v282
        %v284 = vld [vmem:[#allocation3] sm:$0xff]
        %v285 = vsel %vm264, 1, 0
        %v286 = vcvt.s32.f32 %v285
        %v287 = vadd.f32 %v284, %v286
        %288 = vst [vmem:[#allocation3] sm:$0xff] %v287
        // Predicated region
        $region41: #{tpu_custom_call.1} parent=27 // pred_check
          %p289 = pneg %p256
        $region42: #{tpu_custom_call.1} parent=27 // pred_check_branch
          %291 = sbr.rel (%p289) target = $region44
        $region43: #{tpu_custom_call.1} parent=27 // pred_region
          %v292 = vld [vmem:[#allocation2] sm:$0xff]
          %293 = vadd.xlane.f32.xlu0 %v292
          %v294 = vpop.xlane.xlu0 %293
          %v295 = vrot.slane %v294, 4
          %v296 = vadd.f32 %v294, %v295
          %v297 = vrot.slane %v296, 2
          %v298 = vadd.f32 %v296, %v297
          %v299 = vrot.slane %v298, 1
          %v300 = vadd.f32 %v298, %v299
          %s301 = vtos %v300
          %v302 = vstv %s301
          %v303 = vadd.f32 %v302, 0.0
          %304 = vst [vmem:[%s248] sm:$0xff] %v303
          %v305 = vld [vmem:[#allocation3] sm:$0xff]
          %306 = vadd.xlane.f32.xlu0 %v305
          %v307 = vpop.xlane.xlu0 %306
          %v308 = vrot.slane %v307, 4
          %v309 = vadd.f32 %v307, %v308
          %v310 = vrot.slane %v309, 2
          %v311 = vadd.f32 %v309, %v310
          %v312 = vrot.slane %v311, 1
          %v313 = vadd.f32 %v311, %v312
          %s314 = vtos %v313
          %v315 = vstv %s314
          %v316 = vadd.f32 %v315, 0.0
          %317 = vst [vmem:[%s255] sm:$0xff] %v316
        $region44: #{tpu_custom_call.1} parent=27 // pred_fallthru
          _
        %s318 = sand.u32 %s103, 1
        %s319 = scalar_lea.sflag [#allocation6], %s318
        %s320 = sand.u32 %s103, 1
        %s321 = smul.addr %s320, 8
        %s322 = scalar_lea.vmem [#allocation9], %s321
        %s323 = sand.u32 %s129, 1
        %s324 = scalar_lea.sflag [#allocation11], %s323
        %s325 = sand.u32 %s129, 1
        %s326 = smul.addr %s325, 8
        %s327 = scalar_lea.vmem [#allocation10], %s326
        // Predicated region
        $region45: #{tpu_custom_call.1} parent=27 // pred_check
          %p328 = pneg %p113
        $region46: #{tpu_custom_call.1} parent=27 // pred_check_branch
          %330 = sbr.rel (%p328) target = $region48
        $region47: #{tpu_custom_call.1} parent=27 // pred_region
          %332 = vsyncadd %s319, 0
          %s333 = smul.addr %s31, 8
          %s334 = scalar_lea.hbm %s2, %s333
          %s336 = sshll.u32 %s322, 4
          %s337 = int_to_ptr.vmem [resolvable:$true] %s336
          %s338 = sshll.u32 %s334, 4
          %s339 = int_to_ptr.hbm [resolvable:$true] %s338
          %341 = dma.vmem_to_hbm [thread:$0]  %s337, 128, %s339, %s319
        $region48: #{tpu_custom_call.1} parent=27 // pred_fallthru
          _
        // Predicated region
        $region49: #{tpu_custom_call.1} parent=27 // pred_check
          %p342 = pneg %p139
        $region50: #{tpu_custom_call.1} parent=27 // pred_check_branch
          %344 = sbr.rel (%p342) target = $region52
        $region51: #{tpu_custom_call.1} parent=27 // pred_region
          %346 = vsyncadd %s324, 0
          %s347 = smul.addr %s31, 8
          %s348 = scalar_lea.hbm %s3, %s347
          %s350 = sshll.u32 %s327, 4
          %s351 = int_to_ptr.vmem [resolvable:$true] %s350
          %s352 = sshll.u32 %s348, 4
          %s353 = int_to_ptr.hbm [resolvable:$true] %s352
          %355 = dma.vmem_to_hbm [thread:$0]  %s351, 128, %s353, %s324
        $region52: #{tpu_custom_call.1} parent=27 // pred_fallthru
          _
      $region28: #{tpu_custom_call.1} parent=5 // pred_fallthru
        _
      %p356 = scmp.le.s32.totalorder 2, %s22
      // Predicated region
      $region53: #{tpu_custom_call.1} parent=5 // pred_check
        %p357 = pneg %p356
      $region54: #{tpu_custom_call.1} parent=5 // pred_check_branch
        %359 = sbr.rel (%p357) target = $region56
      $region55: #{tpu_custom_call.1} parent=5 // pred_region
        %s360 = ssub.s32 %s22, 2
        // Predicated region
        $region57: #{tpu_custom_call.1} parent=55 // pred_check
          %p361 = pneg %p119
        $region58: #{tpu_custom_call.1} parent=55 // pred_check_branch
          %363 = sbr.rel (%p361) target = $region60
        $region59: #{tpu_custom_call.1} parent=55 // pred_region
          %s364 = sand.u32 %s104, 1
          %s365 = scalar_lea.sflag [#allocation6], %s364
          %s366 = sand.u32 %s104, 1
          %s367 = smul.addr %s366, 8
          %s368 = scalar_lea.vmem [#allocation9], %s367
          %370 = dma.done %s365, 128
        $region60: #{tpu_custom_call.1} parent=55 // pred_fallthru
          _
        // Predicated region
        $region61: #{tpu_custom_call.1} parent=55 // pred_check
          %p371 = pneg %p145
        $region62: #{tpu_custom_call.1} parent=55 // pred_check_branch
          %373 = sbr.rel (%p371) target = $region64
        $region63: #{tpu_custom_call.1} parent=55 // pred_region
          %s374 = sand.u32 %s130, 1
          %s375 = scalar_lea.sflag [#allocation11], %s374
          %s376 = sand.u32 %s130, 1
          %s377 = smul.addr %s376, 8
          %s378 = scalar_lea.vmem [#allocation10], %s377
          %380 = dma.done %s375, 128
        $region64: #{tpu_custom_call.1} parent=55 // pred_fallthru
          _
      $region56: #{tpu_custom_call.1} parent=5 // pred_fallthru
        _
    $region6: #{tpu_custom_call.1} parent=1 // loop_footer
      %s26 = sadd.s32 1, %s22
    $region7: #{tpu_custom_call.1} parent=1 // loop_footer_branch
      %21 = sbr.rel target = $region3
    $region8: #{tpu_custom_call.1} parent=1 // loop_exit
      _
    %381 = vsyncpa [#allocation5], 1
    %s382 = scalar_lea.sflag [#allocation5], 1
    %383 = vsyncpa %s382, 1
    %384 = vsyncpa [#allocation8], 1
    %s385 = scalar_lea.sflag [#allocation8], 1
    %386 = vsyncpa %s385, 1
    %387 = vsyncpa [#allocation6], 1
    %s388 = scalar_lea.sflag [#allocation6], 1
    %389 = vsyncpa %s388, 1
    %390 = vsyncpa [#allocation11], 1
    %s391 = scalar_lea.sflag [#allocation11], 1
    %392 = vsyncpa %s391, 1

</llo_original>
